<compile_context>
chip_gen: v5e
topology: v5e:2x2
jax: 0.10.0
libtpu: 0.0.40
codegen_flags: <defaults>
</compile_context>

<pallas_src>
import functools

import jax
import jax.numpy as jnp
from jax import lax
from jax.experimental import pallas as pl
from jax.experimental.pallas import tpu as pltpu


def _cross_entropy_partial_kernel(logits_ref, labels_ref, partial_ref, *, total_n):
    # logits_ref:  (TILE_N, C) input dtype (bf16 stays bf16), VMEM
    # labels_ref:  (TILE_N, 1) int32, VMEM
    # partial_ref: (1, 1, 1) float32, VMEM -- this tile's masked loss sum
    i = pl.program_id(0)
    x = logits_ref[...]                                      # (TILE_N, C) native dtype
    labels = labels_ref[...]                                 # (TILE_N, 1) int32
    tn, c = x.shape

    # Rows past the true batch size (partial last tile) contain garbage; they
    # are excluded with a *select* below, so NaN/Inf from those rows cannot
    # propagate into the partial sum.  (Do NOT turn that select into a mul.)
    row_ids = i * tn + lax.broadcasted_iota(jnp.int32, (tn, 1), 0)
    valid = row_ids < total_n

    # Row max in the native dtype (exact; keeps bf16 vregs packed on v6e/v7x).
    # exp / log-sum-exp accumulate in f32 for accuracy (widening is exact).
    row_max = jnp.max(x, axis=-1, keepdims=True)                       # (TILE_N, 1)
    shifted = x.astype(jnp.float32) - row_max.astype(jnp.float32)      # (TILE_N, C) f32
    lse = jnp.log(jnp.sum(jnp.exp(shifted), axis=-1, keepdims=True))   # (TILE_N, 1)

    # Gather the picked (label) logit from the shifted values; the row max
    # cancels in (lse - picked), saving one full-tile pass.
    # TODO(synk): out-of-range labels silently yield picked == 0 (loss == lse
    # for that row); ContrastiveLoss never relies on ignore_index semantics.
    col_ids = lax.broadcasted_iota(jnp.int32, (tn, c), 1)              # (TILE_N, C)
    picked = jnp.sum(jnp.where(col_ids == labels, shifted, 0.0),
                     axis=-1, keepdims=True)                           # (TILE_N, 1)

    per_row = jnp.where(valid, lse - picked, 0.0)                      # select, not multiply
    partial_ref[...] = jnp.sum(per_row, axis=0, keepdims=True).reshape(1, 1, 1)


def _vmem_budgets():
    """Per-generation (vmem_limit_bytes, working-set budget) in bytes."""
    try:
        cap = int(getattr(pltpu.get_tpu_info(), "vmem_capacity_bytes", 0))
    except Exception:
        cap = 0
    if cap >= 100 * 1024 * 1024:                 # v5e / v6e: 128 MiB physical VMEM
        return 64 * 1024 * 1024, 40 * 1024 * 1024
    # v7x (64 MiB physical) or unknown chip: stay conservative.
    return 32 * 1024 * 1024, 20 * 1024 * 1024


def _choose_tile_n(n, c, itemsize, work_budget_bytes):
    """Largest row tile whose in-flight VMEM footprint fits the budget.

    Per-row footprint ~= 2 * C * itemsize   (double-buffered logits tile)
                       + 3 * C * 4          (f32 shifted / exp temporaries)
                       + 2 * 128 * 4        (lane-padded labels block, x2 bufs)
    """
    per_row = 2 * c * itemsize + 3 * c * 4 + 2 * 128 * 4
    # Whole problem fits in one block: a full-extent block is always legal
    # (no 8/16-row rounding, no nearly-empty trailing grid step).
    if n * per_row <= work_budget_bytes:
        return n
    align = 16 if itemsize == 2 else 8           # bf16 packs (16, 128) sublane tiles
    rows = max(align, work_budget_bytes // per_row)
    return max(align, (min(n, int(rows)) // align) * align)


def contrastive_loss(logits_simple, contrast_label, *, tile_n=None):
    """Equivalent of ContrastiveLoss.forward: mean cross-entropy.

    logits_simple:  (N, C) float array (f32 or bf16; passed through un-cast)
    contrast_label: (N,) integer class indices
    Returns a float32 scalar.
    """
    n, c = logits_simple.shape
    labels_2d = contrast_label.astype(jnp.int32).reshape(n, 1)
    itemsize = logits_simple.dtype.itemsize

    vmem_limit, work_budget = _vmem_budgets()
    if tile_n is None:
        tile_n = _choose_tile_n(n, c, itemsize, work_budget)
    num_tiles = pl.cdiv(n, tile_n)

    kernel = functools.partial(_cross_entropy_partial_kernel, total_n=n)

    cost = pl.CostEstimate(
        flops=int(5 * n * c),
        transcendentals=int(n * c),
        bytes_accessed=int(n * c * itemsize + n * 4 + num_tiles * 4),
    )

    partials = pl.pallas_call(
        kernel,
        out_shape=jax.ShapeDtypeStruct((num_tiles, 1, 1), jnp.float32),
        grid_spec=pltpu.PrefetchScalarGridSpec(
            num_scalar_prefetch=0,
            grid=(num_tiles,),
            in_specs=[
                pl.BlockSpec((tile_n, c), lambda i: (i, 0)),
                pl.BlockSpec((tile_n, 1), lambda i: (i, 0)),
            ],
            out_specs=pl.BlockSpec((1, 1, 1), lambda i: (i, 0, 0)),
        ),
        compiler_params=pltpu.CompilerParams(
            dimension_semantics=("parallel",),      # independent partials -> both TCs on v7x
            vmem_limit_bytes=vmem_limit,
        ),
        cost_estimate=cost,
    )(logits_simple, labels_2d)

    # Tiny (num_tiles-element) final reduction in plain XLA.
    return jnp.sum(partials) * jnp.float32(1.0 / n)


def _reference(logits, labels):
    logp = jax.nn.log_softmax(logits.astype(jnp.float32), axis=-1)
    return -jnp.mean(logp[jnp.arange(logits.shape[0]), labels])


if __name__ == "__main__":
    key = jax.random.PRNGKey(0)
    k1, k2, k3, k4 = jax.random.split(key, 4)

    # 1) Small shape matching the module's typical use (single full-extent block).
    N, C = 8, 32
    logits = jax.random.normal(k1, (N, C), dtype=jnp.float32)
    labels = jax.random.randint(k2, (N,), 0, C, dtype=jnp.int32)
    loss = contrastive_loss(logits, labels)
    jax.block_until_ready(loss)
    ref = _reference(logits, labels)
    assert jnp.allclose(loss, ref, atol=1e-5, rtol=1e-5), (loss, ref)

    # 2) Larger, non-divisible batch exercising the tiled parallel grid +
    #    partial-tile masking (3 tiles: 128, 128, 44 valid rows).
    N2, C2 = 300, 384
    logits2 = jax.random.normal(k3, (N2, C2), dtype=jnp.float32)
    labels2 = jax.random.randint(k4, (N2,), 0, C2, dtype=jnp.int32)
    loss2 = contrastive_loss(logits2, labels2, tile_n=128)
    jax.block_until_ready(loss2)
    ref2 = _reference(logits2, labels2)
    assert jnp.allclose(loss2, ref2, atol=1e-5, rtol=1e-5), (loss2, ref2)

    # 3) bf16 logits pass-through (row max in bf16, exp/lse widened to f32).
    logits2_bf16 = logits2.astype(jnp.bfloat16)
    loss3 = contrastive_loss(logits2_bf16, labels2, tile_n=128)
    jax.block_until_ready(loss3)
    ref3 = _reference(logits2_bf16, labels2)
    assert jnp.allclose(loss3, ref3, atol=1e-4, rtol=1e-4), (loss3, ref3)

    print("KERNEL_OK")
</pallas_src>

<mosaic_0001>
module attributes {stable_mosaic.version = 11 : i64} {
  func.func @_cross_entropy_partial_kernel(%arg0: i32, %arg1: memref<8x32xf32, #tpu.memory_space<vmem>>, %arg2: memref<8x1xi32, #tpu.memory_space<vmem>>, %arg3: memref<1x1x1xf32, #tpu.memory_space<vmem>>) attributes {dimension_semantics = [#tpu.dimension_semantics<parallel>], iteration_bounds = array<i64: 1>, scalar_prefetch = 0 : i64, scratch_operands = 0 : i64, tpu.core_type = #tpu.core_type<tc>, window_params = [{transform_indices = @transform_0, window_bounds = array<i64: 8, 32>}, {transform_indices = @transform_1, window_bounds = array<i64: 8, 1>}, {transform_indices = @transform_2, window_bounds = array<i64: 1, 1, 1>}]} {
    %c0 = arith.constant 0 : index
    %c0_0 = arith.constant 0 : index
    %0 = vector.load %arg1[%c0, %c0_0] : memref<8x32xf32, #tpu.memory_space<vmem>>, vector<8x32xf32>
    %c0_1 = arith.constant 0 : index
    %c0_2 = arith.constant 0 : index
    %1 = vector.load %arg2[%c0_1, %c0_2] : memref<8x1xi32, #tpu.memory_space<vmem>>, vector<8x1xi32>
    %c8_i32 = arith.constant 8 : i32
    %2 = arith.muli %arg0, %c8_i32 : i32
    %3 = tpu.iota {dimensions = array<i32: 0>} : vector<8x1xi32>
    %4 = vector.broadcast %2 : i32 to vector<8x1xi32>
    %5 = arith.addi %4, %3 : vector<8x1xi32>
    %c8_i32_3 = arith.constant 8 : i32
    %6 = vector.broadcast %c8_i32_3 : i32 to vector<8x1xi32>
    %7 = arith.cmpi slt, %5, %6 : vector<8x1xi32>
    %cst = arith.constant dense<0xFF800000> : vector<8xf32>
    %8 = vector.multi_reduction <maximumf>, %0, %cst [1] : vector<8x32xf32> to vector<8xf32>
    %9 = vector.shape_cast %8 : vector<8xf32> to vector<8x1xf32>
    %10 = vector.broadcast %9 : vector<8x1xf32> to vector<8x32xf32>
    %11 = arith.subf %0, %10 : vector<8x32xf32>
    %12 = math.exp %11 : vector<8x32xf32>
    %cst_4 = arith.constant dense<0.000000e+00> : vector<8xf32>
    %13 = vector.multi_reduction <add>, %12, %cst_4 [1] : vector<8x32xf32> to vector<8xf32>
    %14 = vector.shape_cast %13 : vector<8xf32> to vector<8x1xf32>
    %15 = math.log %14 : vector<8x1xf32>
    %16 = tpu.iota {dimensions = array<i32: 1>} : vector<8x32xi32>
    %17 = vector.broadcast %1 : vector<8x1xi32> to vector<8x32xi32>
    %18 = arith.cmpi eq, %16, %17 : vector<8x32xi32>
    %cst_5 = arith.constant 0.000000e+00 : f32
    %19 = vector.broadcast %cst_5 : f32 to vector<8x32xf32>
    %20 = arith.select %18, %11, %19 : vector<8x32xi1>, vector<8x32xf32>
    %cst_6 = arith.constant dense<0.000000e+00> : vector<8xf32>
    %21 = vector.multi_reduction <add>, %20, %cst_6 [1] : vector<8x32xf32> to vector<8xf32>
    %22 = vector.shape_cast %21 : vector<8xf32> to vector<8x1xf32>
    %23 = arith.subf %15, %22 : vector<8x1xf32>
    %cst_7 = arith.constant 0.000000e+00 : f32
    %24 = vector.broadcast %cst_7 : f32 to vector<8x1xf32>
    %25 = arith.select %7, %23, %24 : vector<8x1xi1>, vector<8x1xf32>
    %cst_8 = arith.constant dense<0.000000e+00> : vector<1xf32>
    %26 = vector.multi_reduction <add>, %25, %cst_8 [0] : vector<8x1xf32> to vector<1xf32>
    %27 = vector.shape_cast %26 : vector<1xf32> to vector<1x1xf32>
    %28 = vector.shape_cast %27 : vector<1x1xf32> to vector<1x1x1xf32>
    %c0_9 = arith.constant 0 : index
    %c0_10 = arith.constant 0 : index
    %c0_11 = arith.constant 0 : index
    %29 = vector.load %arg3[%c0_9, %c0_10, %c0_11] : memref<1x1x1xf32, #tpu.memory_space<vmem>>, vector<1x1x1xf32>
    tpu.vector_store %arg3[%c0_9, %c0_10, %c0_11], %28 {strides = array<i32>} : memref<1x1x1xf32, #tpu.memory_space<vmem>>, vector<1x1x1xf32>,
    return
  }
  func.func @transform_0(%arg0: i32) -> (i32, i32) {
    %c0_i32 = arith.constant 0 : i32
    %c0_i32_0 = arith.constant 0 : i32
    return %arg0, %c0_i32 : i32, i32
  }
  func.func @transform_1(%arg0: i32) -> (i32, i32) {
    %c0_i32 = arith.constant 0 : i32
    %c0_i32_0 = arith.constant 0 : i32
    return %arg0, %c0_i32 : i32, i32
  }
  func.func @transform_2(%arg0: i32) -> (i32, i32, i32) {
    %c0_i32 = arith.constant 0 : i32
    %c0_i32_0 = arith.constant 0 : i32
    %c0_i32_1 = arith.constant 0 : i32
    return %arg0, %c0_i32, %c0_i32_0 : i32, i32, i32
  }
}

</mosaic_0001>

<llo_original>
// kernel: tpu_custom_call.1
$region0: #{tpu_custom_call.1}
  #allocation0 [shape = 'u32[]', space=smem, size = 0x4, offset = 0x4, fixed_abs, tag = 'smem constant byte address 0x4 - core index']
  #allocation1 [shape = 'u32[72,128]{1,0:T(1,128)}', space=vmem, size = 0x9000, scoped, tag = 'internal scratch']
  %s0 = inlined_call_operand.vmem [shape: f32[8,32], index: 0, kind: input, shape index: {}]
  %s1 = inlined_call_operand.vmem [shape: s32[8,1], index: 1, kind: input, shape index: {}]
  %s2 = inlined_call_operand.hbm [shape: f32[1,1,1], index: 2, kind: output, shape index: {}]
  %s3 = sld [smem:[#allocation0]]
  $region18: #{tpu_custom_call.1} parent=0
    _
  %s5 = ssub.s32 1, %s3
  %s6 = scalar_select 0, %s5, %s3
  $region1: #{tpu_custom_call.1} parent=0
    #allocation2 [shape = 'u8[512]{0}', space=vmem, size = 0x400, scoped, tag = 'output window, operand 0, single buffered']
    #allocation3 [shape = 's32[1]{0}', space=sflag, size = 0x4, scoped, tag = 'scoped memory for tpu_custom_call.1']
    %7 = vsyncpa [#allocation3], 0
    // Predicated region
    $region2: #{tpu_custom_call.1} parent=1 // pred_check
      _
    $region3: #{tpu_custom_call.1} parent=1 // pred_check_branch
      %9 = sbr.rel (0) target = $region5
    $region4: #{tpu_custom_call.1} parent=1 // pred_region
      _
    $region5: #{tpu_custom_call.1} parent=1 // pred_fallthru
      _
    // Predicated region
    $region6: #{tpu_custom_call.1} parent=1 // pred_check
      _
    $region7: #{tpu_custom_call.1} parent=1 // pred_check_branch
      %11 = sbr.rel (0) target = $region9
    $region8: #{tpu_custom_call.1} parent=1 // pred_region
      _
    $region9: #{tpu_custom_call.1} parent=1 // pred_fallthru
      _
    %v12 = vld [vmem:[%s0] sm:$0xff]
    %v13 = vld [vmem:[%s1] sm:$0xff]
    %s14 = smul.u32 0, 8
    %v15 = vlaneseq
    %v16 = vshrl.u32 %v15, 7
    %v17 = vstv %s14
    %v18 = vadd.s32 %v17, %v16
    %vm19 = vcmp.lt.s32.totalorder %v18, 8
    %vm20 = vcmask 261120
    %v21 = vsel %vm20, %v12, -inf
    %22 = vmax.xlane.f32.xlu0 %v21
    %v23 = vpop.xlane.xlu0 %22
    %v24 = vsub.f32 %v12, %v23
    %v25 = vmul.f32 %v24, 1.442695
    %v26 = vpow.pop %v25
    %v27 = vsel %vm20, %v26, 0.0
    %28 = vadd.xlane.f32.xlu0 %v27
    %v29 = vpop.xlane.xlu0 %28
    %v30 = vlog2.pop %v29
    %v31 = vmul.f32 %v30, 0.6931472
    %v32 = vlaneseq
    %v33 = vand.u32 %v32, 127
    %34 = vset.pattern.permute.xlu0 0
    %35 = vperm.xlu0 %34, %v13
    %v36 = vpop.permute.xlu0 %35
    %vm37 = vcmp.eq.s32.totalorder %v33, %v36
    %v38 = vsel %vm37, %v24, 0.0
    %v39 = vsel %vm20, %v38, 0.0
    %40 = vadd.xlane.f32.xlu0 %v39
    %v41 = vpop.xlane.xlu0 %40
    %v42 = vsub.f32 %v31, %v41
    %v43 = vsel %vm19, %v42, 0.0
    %v44 = vrot.slane %v43, 4
    %v45 = vadd.f32 %v43, %v44
    %v46 = vrot.slane %v45, 2
    %v47 = vadd.f32 %v45, %v46
    %v48 = vrot.slane %v47, 1
    %v49 = vadd.f32 %v47, %v48
    %vm50 = vcmask 0
    %51 = vst.msk [vmem:[#allocation2] sm:$0x1] %vm50, %v49
    // Predicated region
    $region10: #{tpu_custom_call.1} parent=1 // pred_check
      _
    $region11: #{tpu_custom_call.1} parent=1 // pred_check_branch
      %53 = sbr.rel (0) target = $region13
    $region12: #{tpu_custom_call.1} parent=1 // pred_region
      %55 = vsyncadd [#allocation3], 0
      %s57 = sshll.u32 [#allocation2], 4
      %s58 = int_to_ptr.vmem [resolvable:$true] %s57
      %s59 = sshll.u32 %s2, 4
      %s60 = int_to_ptr.hbm [resolvable:$true] %s59
      %62 = dma.vmem_to_hbm [thread:$0]  %s58, 16, %s60, [#allocation3]
    $region13: #{tpu_custom_call.1} parent=1 // pred_fallthru
      _
    // Predicated region
    $region14: #{tpu_custom_call.1} parent=1 // pred_check
      _
    $region15: #{tpu_custom_call.1} parent=1 // pred_check_branch
      %64 = sbr.rel (0) target = $region17
    $region16: #{tpu_custom_call.1} parent=1 // pred_region
      %66 = dma.done [#allocation3], 16
    $region17: #{tpu_custom_call.1} parent=1 // pred_fallthru
      _
    %67 = vsyncpa [#allocation3], 1

</llo_original>
